<compile_context>
chip_gen: v7x
topology: tpu7x:2x2x1
jax: 0.10.0
libtpu: 0.0.40
codegen_flags: <defaults>
</compile_context>

<pallas_src>
import functools
import math

import numpy as np
import jax
import jax.numpy as jnp
from jax.experimental import pallas as pl
from jax.experimental.pallas import tpu as pltpu

SEQ_LEN = 8
D_MODEL = 32


def _build_pe_matrix(seq_len: int, d_model: int) -> jnp.ndarray:
    """Deterministic positional-encoding parameter, exactly as __init__ does."""
    pe = np.zeros((seq_len, d_model), dtype=np.float32)
    for pos in range(seq_len):
        for i in range(d_model):
            arg = pos / (10000.0 ** (2.0 * i / d_model))  # 2*i on purpose
            pe[pos, i] = math.sin(arg) if i % 2 == 0 else math.cos(arg)
    return jnp.asarray(pe)[None, :, :]  # [1, S, D]


def _pos_enc_kernel(x_ref, pe_ref, o_ref, *, scale):
    # x_ref: (TB, S*D)   pe_ref: (1, S*D)   o_ref: (TB, S*D)
    # Lane-dense elementwise hot path; f32 internal math, cast on store so
    # bf16 I/O is supported. pe broadcasts over the row (batch) axis.
    x = x_ref[...].astype(jnp.float32)
    pe = pe_ref[...].astype(jnp.float32)
    o_ref[...] = (x * scale + pe).astype(o_ref.dtype)


def _row_tile(batch: int, max_rows: int, mult: int):
    """Pick (tile_rows, n_steps).

    Small inputs -> one whole-array block (no grid overhead). Large inputs ->
    an EVEN number of balanced, `mult`-aligned row tiles so the parallel grid
    axis splits evenly across v7x's two TensorCores.
    """
    if batch <= max_rows:
        return batch, 1
    n = -(-batch // max_rows)          # cdiv
    if n % 2:
        n += 1                         # even step count -> 2-TC balance
    tb = -(-batch // n)                # balanced rows per step
    tb = -(-tb // mult) * mult         # sublane-aligned (8 f32 / 16 bf16)
    return tb, -(-batch // tb)


def positional_encoder_ex(x: jnp.ndarray, pe: jnp.ndarray,
                          *, max_rows_per_tile: int = 4096) -> jnp.ndarray:
    """x: [B, S, D] (f32 or bf16); pe: [1, S, D] f32 -> [B, S, D] in x.dtype."""
    B, S, D = x.shape
    scale = math.sqrt(D)
    SD = S * D  # 256 for (8, 32): multiple of 128 -> lane-dense, unmasked vst

    # Flatten to a lane-dense 2-D view; pe stays un-broadcast ([1, SD], f32).
    x2 = x.reshape(B, SD)
    pe2 = pe.reshape(1, SD).astype(jnp.float32)

    # Sublane multiple: 8 rows for 4-byte dtypes, 16 for 2-byte (bf16), etc.
    itemsize = jnp.dtype(x.dtype).itemsize
    mult = 8 * max(1, 4 // itemsize)

    tb, n_steps = _row_tile(B, max_rows_per_tile, mult)

    kernel = functools.partial(_pos_enc_kernel, scale=scale)

    out2 = pl.pallas_call(
        kernel,
        out_shape=jax.ShapeDtypeStruct((B, SD), x.dtype),
        grid_spec=pl.GridSpec(
            grid=(n_steps,),
            in_specs=[
                pl.BlockSpec((tb, SD), lambda i: (i, 0)),  # x: row tiles
                pl.BlockSpec((1, SD), lambda i: (0, 0)),   # pe: invariant, resident
            ],
            out_specs=pl.BlockSpec((tb, SD), lambda i: (i, 0)),
        ),
        compiler_params=pltpu.CompilerParams(
            # Parallel row-tile axis -> shardable across v7x's 2 TensorCores.
            dimension_semantics=("parallel",),
            # 4 MiB f32 tiles, double-buffered x + out = 16 MiB working set:
            # raise the scoped-VMEM limit past v5e's 16 MiB default while
            # staying well inside v7x's 64 MiB physical VMEM.
            vmem_limit_bytes=32 * 1024 * 1024,
        ),
    )(x2, pe2)

    return out2.reshape(B, S, D)


if __name__ == "__main__":
    pe = _build_pe_matrix(SEQ_LEN, D_MODEL)
    scale = math.sqrt(D_MODEL)

    # Small case matching the module's natural shapes (single whole-array block).
    B = 2
    x = jax.random.normal(jax.random.PRNGKey(0), (B, SEQ_LEN, D_MODEL),
                          dtype=jnp.float32)
    out = jax.block_until_ready(positional_encoder_ex(x, pe))
    ref = x * scale + pe
    np.testing.assert_allclose(np.asarray(out), np.asarray(ref),
                               rtol=1e-6, atol=1e-6)

    # Larger, non-multiple batch to exercise the even-split multi-step grid
    # and the ragged last tile (B=8200 -> 4 balanced tiles of 2056 rows).
    B_big = 8200
    x_big = jax.random.normal(jax.random.PRNGKey(1), (B_big, SEQ_LEN, D_MODEL),
                              dtype=jnp.float32)
    out_big = jax.block_until_ready(positional_encoder_ex(x_big, pe))
    ref_big = x_big * scale + pe
    np.testing.assert_allclose(np.asarray(out_big), np.asarray(ref_big),
                               rtol=1e-6, atol=1e-6)

    # bf16 I/O path: half the HBM traffic; f32 internal add, cast on store.
    x_bf = x_big.astype(jnp.bfloat16)
    out_bf = jax.block_until_ready(positional_encoder_ex(x_bf, pe))
    ref_bf = (x_bf.astype(jnp.float32) * scale + pe).astype(jnp.bfloat16)
    np.testing.assert_allclose(np.asarray(out_bf.astype(jnp.float32)),
                               np.asarray(ref_bf.astype(jnp.float32)),
                               rtol=2e-2, atol=2e-2)

    print("KERNEL_OK")
</pallas_src>

<mosaic_0001>
module attributes {stable_mosaic.version = 11 : i64} {
  func.func @_pos_enc_kernel(%arg0: i32, %arg1: memref<2x256xf32, #tpu.memory_space<vmem>>, %arg2: memref<1x256xf32, #tpu.memory_space<vmem>>, %arg3: memref<2x256xf32, #tpu.memory_space<vmem>>) attributes {dimension_semantics = [#tpu.dimension_semantics<parallel>], iteration_bounds = array<i64: 1>, scalar_prefetch = 0 : i64, scratch_operands = 0 : i64, tpu.core_type = #tpu.core_type<tc>, window_params = [{transform_indices = @transform_0, window_bounds = array<i64: 2, 256>}, {pipeline_mode = #tpu.pipeline_mode<synchronous>, transform_indices = @transform_1, window_bounds = array<i64: 1, 256>}, {transform_indices = @transform_2, window_bounds = array<i64: 2, 256>}]} {
    %c0 = arith.constant 0 : index
    %c0_0 = arith.constant 0 : index
    %0 = vector.load %arg1[%c0, %c0_0] : memref<2x256xf32, #tpu.memory_space<vmem>>, vector<2x256xf32>
    %c0_1 = arith.constant 0 : index
    %c0_2 = arith.constant 0 : index
    %1 = vector.load %arg2[%c0_1, %c0_2] : memref<1x256xf32, #tpu.memory_space<vmem>>, vector<1x256xf32>
    %cst = arith.constant 5.65685415 : f32
    %2 = vector.broadcast %cst : f32 to vector<2x256xf32>
    %3 = arith.mulf %0, %2 : vector<2x256xf32>
    %4 = vector.broadcast %1 : vector<1x256xf32> to vector<2x256xf32>
    %5 = arith.addf %3, %4 : vector<2x256xf32>
    %c0_3 = arith.constant 0 : index
    %c0_4 = arith.constant 0 : index
    %6 = vector.load %arg3[%c0_3, %c0_4] : memref<2x256xf32, #tpu.memory_space<vmem>>, vector<2x256xf32>
    tpu.vector_store %arg3[%c0_3, %c0_4], %5 {strides = array<i32>} : memref<2x256xf32, #tpu.memory_space<vmem>>, vector<2x256xf32>,
    return
  }
  func.func @transform_0(%arg0: i32) -> (i32, i32) {
    %c0_i32 = arith.constant 0 : i32
    %c0_i32_0 = arith.constant 0 : i32
    return %arg0, %c0_i32 : i32, i32
  }
  func.func @transform_1(%arg0: i32) -> (i32, i32) {
    %c0_i32 = arith.constant 0 : i32
    %c0_i32_0 = arith.constant 0 : i32
    %c0_i32_1 = arith.constant 0 : i32
    return %c0_i32, %c0_i32_0 : i32, i32
  }
  func.func @transform_2(%arg0: i32) -> (i32, i32) {
    %c0_i32 = arith.constant 0 : i32
    %c0_i32_0 = arith.constant 0 : i32
    return %arg0, %c0_i32 : i32, i32
  }
}

</mosaic_0001>

<llo_original>
// kernel: tpu_custom_call.1
$region0: #{tpu_custom_call.1}
  #allocation0 [shape = 'u32[]', space=smem, size = 0x4, offset = 0x4, fixed_abs, tag = 'smem constant byte address 0x4 - core index']
  #allocation1 [shape = 'u32[144,128]{1,0:T(1,128)}', space=vmem, size = 0x12000, scoped, tag = 'internal scratch']
  %s0 = inlined_call_operand.hbm [shape: f32[2,256], index: 0, kind: input, shape index: {}]
  %s1 = inlined_call_operand.vmem [shape: f32[1,256], index: 1, kind: input, shape index: {}]
  %s2 = inlined_call_operand.hbm [shape: f32[2,256], index: 2, kind: output, shape index: {}]
  %s3 = sld [smem:[#allocation0]]
  $region22: #{tpu_custom_call.1} parent=0
    _
  %s5 = ssub.s32 1, %s3
  %s6 = scalar_select 0, %s5, %s3
  $region1: #{tpu_custom_call.1} parent=0
    #allocation2 [shape = 'u8[2048]{0}', space=vmem, size = 0x800, scoped, tag = 'input window, operand 0, single buffered']
    #allocation3 [shape = 's32[1]{0}', space=sflag, size = 0x4, scoped, tag = 'scoped memory for tpu_custom_call.1']
    #allocation4 [shape = 's32[1]{0}', space=sflag, size = 0x4, scoped, tag = 'scoped memory for tpu_custom_call.1']
    #allocation5 [shape = 'u8[2048]{0}', space=vmem, size = 0x800, scoped, tag = 'output window, operand 0, single buffered']
    %7 = vsyncpa [#allocation3], 0
    %8 = vsyncpa [#allocation4], 0
    // Predicated region
    $region2: #{tpu_custom_call.1} parent=1 // pred_check
      _
    $region3: #{tpu_custom_call.1} parent=1 // pred_check_branch
      %10 = sbr.rel (0) target = $region5
    $region4: #{tpu_custom_call.1} parent=1 // pred_region
      %s12 = ssub.s32 64, 64
      %13 = vsyncadd [#allocation3], %s12
      %s15 = sshll.u32 [#allocation2], 4
      %s16 = int_to_ptr.vmem [resolvable:$true] %s15
      %18 = dma.hbm_to_vmem [thread:$0]  %s0, 64, %s16, [#allocation3]
    $region5: #{tpu_custom_call.1} parent=1 // pred_fallthru
      _
    // Predicated region
    $region6: #{tpu_custom_call.1} parent=1 // pred_check
      _
    $region7: #{tpu_custom_call.1} parent=1 // pred_check_branch
      %20 = sbr.rel (0) target = $region9
    $region8: #{tpu_custom_call.1} parent=1 // pred_region
      _
    $region9: #{tpu_custom_call.1} parent=1 // pred_fallthru
      _
    // Predicated region
    $region10: #{tpu_custom_call.1} parent=1 // pred_check
      _
    $region11: #{tpu_custom_call.1} parent=1 // pred_check_branch
      %22 = sbr.rel (0) target = $region13
    $region12: #{tpu_custom_call.1} parent=1 // pred_region
      %23 = dma.done [#allocation3], 64
    $region13: #{tpu_custom_call.1} parent=1 // pred_fallthru
      _
    %v24 = vld [vmem:[#allocation2] sm:$0xf]
    %v25 = vld [vmem:[%s1] sm:$0x3]
    %v26 = vmul.f32 %v24, 5.656854
    %v28 = vlaneseq
    %v29 = vshrl.u32 %v28, 7
    %v30 = vsub.s32 0, %v29
    %v31 = vrot.slane %v25, %v30
    %v32 = vlaneseq
    %v33 = vshrl.u32 %v32, 7
    %v34 = vsub.s32 1, %v33
    %v35 = vrot.slane %v25, %v34
    %v36 = vcombine.low %v31, %v35
    %v38 = vunpack.c.l.s4 1983009808
    %v39 = vunpack.c.0.s8 %v38
    %v40 = vlaneseq
    %v41 = vshrl.u32 %v40, 7
    %v42 = vsub.s32 %v39, %v41
    %v43 = vrot.slane %v36, %v42
    %v45 = vadd.f32 %v26, %v43
    %46 = vst [vmem:[#allocation5] sm:$0xf] %v45
    // Predicated region
    $region14: #{tpu_custom_call.1} parent=1 // pred_check
      _
    $region15: #{tpu_custom_call.1} parent=1 // pred_check_branch
      %48 = sbr.rel (0) target = $region17
    $region16: #{tpu_custom_call.1} parent=1 // pred_region
      %s50 = ssub.s32 64, 64
      %51 = vsyncadd [#allocation4], %s50
      %s53 = sshll.u32 [#allocation5], 4
      %s54 = int_to_ptr.vmem [resolvable:$true] %s53
      %56 = dma.vmem_to_hbm [thread:$0]  %s54, 64, %s2, [#allocation4]
    $region17: #{tpu_custom_call.1} parent=1 // pred_fallthru
      _
    // Predicated region
    $region18: #{tpu_custom_call.1} parent=1 // pred_check
      _
    $region19: #{tpu_custom_call.1} parent=1 // pred_check_branch
      %58 = sbr.rel (0) target = $region21
    $region20: #{tpu_custom_call.1} parent=1 // pred_region
      %59 = dma.done [#allocation4], 64
    $region21: #{tpu_custom_call.1} parent=1 // pred_fallthru
      _
    %60 = vsyncpa [#allocation3], 1
    %61 = vsyncpa [#allocation4], 1

</llo_original>
